<compile_context>
chip_gen: v6e
topology: v6e:2x2x1
jax: 0.10.0
libtpu: 0.0.40
codegen_flags: <defaults>
</compile_context>

<pallas_src>
import functools

import jax
import jax.numpy as jnp
from jax.experimental import pallas as pl
from jax.experimental.pallas import tpu as pltpu

LANE = 128


def _sublane_multiple(dtype) -> int:
    # Minimal second-minor tile multiple for this dtype (f32: 8, bf16: 16, int8: 32).
    return max(8, 32 // jnp.dtype(dtype).itemsize)


def _default_num_cores() -> int:
    # v7x has 2 TensorCores per chip; v5e/v6e have 1 (an extra "cores" grid
    # axis there only adds wasted clamped steps + an extra partial writeback).
    try:
        kind = jax.devices()[0].device_kind.lower()
    except Exception:
        return 1
    return 2 if "v7" in kind else 1


def _dice_bce_kernel(x_ref, t_ref, o_ref, acc_ref, *,
                     n, block_rows, chunk_rows, steps):
    c = pl.program_id(0)   # "parallel" core-split axis
    s = pl.program_id(1)   # "arbitrary" reduction axis

    @pl.when(s == 0)
    def _init():
        acc_ref[...] = jnp.zeros_like(acc_ref)

    block_elems = block_rows * LANE
    num_chunks = block_rows // chunk_rows
    base = (c * steps + s) * block_elems          # flat offset of this (unclamped) block
    needs_mask = base + block_elems > n           # edge / clamped blocks only

    def _compute(x, t):
        # One softplus + one exp per element:
        #   sp        = softplus(-x) = max(-x,0) + log1p(exp(-|x|))   (stable)
        #   p         = sigmoid(x)   = exp(-sp)
        #   -log(p)   clamped at 100 -> a = min(sp, 100)
        #   -log(1-p) clamped at 100 -> b = min(sp + x, 100)
        #   bce = t*a + (1-t)*b = b + t*(a - b)
        sp = jnp.maximum(-x, 0.0) + jnp.log1p(jnp.exp(-jnp.abs(x)))
        p = jnp.exp(-sp)
        a = jnp.minimum(sp, 100.0)
        b = jnp.minimum(sp + x, 100.0)
        bce = b + t * (a - b)
        return p + t, p * t, bce

    def _fold(pt, inter, bce):
        # Sum across vregs only (pure VPU adds); the cross-lane reduction is
        # deferred to the tiny (cores,3,8,128) partials array in the wrapper.
        acc_ref[0] += jnp.sum(pt.reshape(-1, 8, LANE), axis=0)
        acc_ref[1] += jnp.sum(inter.reshape(-1, 8, LANE), axis=0)
        acc_ref[2] += jnp.sum(bce.reshape(-1, 8, LANE), axis=0)

    @pl.when(jnp.logical_not(needs_mask))
    def _fast_path():
        def body(i, carry):
            r0 = pl.multiple_of(i * chunk_rows, chunk_rows)
            x = x_ref[pl.ds(r0, chunk_rows), :].astype(jnp.float32)
            t = t_ref[pl.ds(r0, chunk_rows), :].astype(jnp.float32)
            _fold(*_compute(x, t))
            return carry
        jax.lax.fori_loop(0, num_chunks, body, 0, unroll=True)

    @pl.when(needs_mask)
    def _masked_path():
        row_ids = jax.lax.broadcasted_iota(jnp.int32, (chunk_rows, LANE), 0)
        col_ids = jax.lax.broadcasted_iota(jnp.int32, (chunk_rows, LANE), 1)

        def body(i, carry):
            r0 = pl.multiple_of(i * chunk_rows, chunk_rows)
            x = x_ref[pl.ds(r0, chunk_rows), :].astype(jnp.float32)
            t = t_ref[pl.ds(r0, chunk_rows), :].astype(jnp.float32)
            flat_idx = base + (r0 + row_ids) * LANE + col_ids
            valid = flat_idx < n
            pt, inter, bce = _compute(x, t)
            zero = jnp.float32(0.0)
            # NOTE: keep the select form; padded tail rows may hold garbage
            # that becomes NaN inside _compute, and where() discards it safely.
            _fold(jnp.where(valid, pt, zero),
                  jnp.where(valid, inter, zero),
                  jnp.where(valid, bce, zero))
            return carry
        jax.lax.fori_loop(0, num_chunks, body, 0, unroll=True)

    @pl.when(s == steps - 1)
    def _finalize():
        o_ref[0] = acc_ref[...]


def dice_bce_loss(inputs, targets, smooth=1.0, block_rows=4096,
                  chunk_rows=512, num_cores=None):
    """Pallas implementation of DiceBCELoss.forward. Returns a scalar f32."""
    x = inputs.reshape(-1)          # keep native dtype; upcast happens in-kernel
    t = targets.reshape(-1)
    n = int(x.shape[0])
    if n == 0:
        # PyTorch: BCE 'mean' over an empty tensor is NaN; dice term is 0.
        return jnp.float32(jnp.nan)

    rows = pl.cdiv(n, LANE)
    padded = rows * LANE
    if padded != n:
        # Only pad the sub-128-lane tail (rare); the in-kernel mask excludes it.
        x = jnp.pad(x, (0, padded - n))
        t = jnp.pad(t, (0, padded - n))
    x = x.reshape(rows, LANE)
    t = t.reshape(rows, LANE)

    mult = max(_sublane_multiple(x.dtype), _sublane_multiple(t.dtype))
    br = min(block_rows, rows)
    br = ((br + mult - 1) // mult) * mult          # sublane-aligned block rows
    ck = min(chunk_rows, br)
    ck = ((ck + mult - 1) // mult) * mult          # sublane-aligned chunk rows
    br = ((br + ck - 1) // ck) * ck                # whole number of chunks per block

    rows_blocks = pl.cdiv(rows, br)
    if num_cores is None:
        num_cores = _default_num_cores()
    cores = max(1, min(num_cores, rows_blocks))    # 2 on v7x, 1 on v5e/v6e
    steps = pl.cdiv(rows_blocks, cores)

    def in_index_map(c, s):
        # A core's trailing steps past the real block count re-read the last
        # block; the in-kernel mask zeroes their contribution.
        return (jnp.minimum(c * steps + s, rows_blocks - 1), 0)

    kernel = functools.partial(_dice_bce_kernel, n=n, block_rows=br,
                               chunk_rows=ck, steps=steps)

    partials = pl.pallas_call(
        kernel,
        out_shape=jax.ShapeDtypeStruct((cores, 3, 8, LANE), jnp.float32),
        grid_spec=pltpu.PrefetchScalarGridSpec(
            num_scalar_prefetch=0,
            grid=(cores, steps),
            in_specs=[
                pl.BlockSpec((br, LANE), in_index_map),
                pl.BlockSpec((br, LANE), in_index_map),
            ],
            out_specs=pl.BlockSpec((1, 3, 8, LANE), lambda c, s: (c, 0, 0, 0)),
            scratch_shapes=[pltpu.VMEM((3, 8, LANE), jnp.float32)],
        ),
        compiler_params=pltpu.CompilerParams(
            dimension_semantics=("parallel", "arbitrary"),
            # Above the 16/32 MiB scoped defaults (needed for the 4096-row
            # tile), comfortably below v7x's 64 MiB physical VMEM.
            vmem_limit_bytes=40 * 1024 * 1024,
        ),
    )(x, t)

    # Tiny cross-lane reduction + loss combine on the (cores, 3, 8, 128) partials.
    sums = jnp.sum(partials, axis=(0, 2, 3))       # -> (3,)
    sum_pt, sum_i, sum_b = sums[0], sums[1], sums[2]
    smooth = jnp.float32(smooth)
    dice_loss = 1.0 - (2.0 * sum_i + smooth) / (sum_pt + smooth)
    bce = sum_b / jnp.float32(n)
    return bce + dice_loss


if __name__ == "__main__":
    key = jax.random.PRNGKey(0)
    k1, k2 = jax.random.split(key)
    # Segmentation-style loss: logits & binary masks, NCHW.
    inputs = jax.random.normal(k1, (2, 4, 16, 16), dtype=jnp.float32)
    targets = (jax.random.uniform(k2, (2, 4, 16, 16)) > 0.5).astype(jnp.float32)

    loss = dice_bce_loss(inputs, targets, smooth=1.0)
    jax.block_until_ready(loss)

    # Pure-JAX reference sanity check (same clamped-BCE + dice formula).
    p = jax.nn.sigmoid(inputs.reshape(-1))
    tt = targets.reshape(-1)
    inter = jnp.sum(p * tt)
    dice_ref = 1.0 - (2.0 * inter + 1.0) / (jnp.sum(p) + jnp.sum(tt) + 1.0)
    bce_ref = jnp.mean(-(tt * jnp.maximum(jnp.log(p), -100.0)
                         + (1.0 - tt) * jnp.maximum(jnp.log1p(-p), -100.0)))
    ref = bce_ref + dice_ref
    assert abs(float(loss) - float(ref)) < 1e-4, (float(loss), float(ref))

    print("KERNEL_OK")
</pallas_src>

<mosaic_0001>
module attributes {stable_mosaic.version = 11 : i64} {
  func.func @_dice_bce_kernel(%arg0: i32, %arg1: i32, %arg2: memref<16x128xf32, #tpu.memory_space<vmem>>, %arg3: memref<16x128xf32, #tpu.memory_space<vmem>>, %arg4: memref<1x3x8x128xf32, #tpu.memory_space<vmem>>, %arg5: memref<3x8x128xf32, #tpu.memory_space<vmem>>) attributes {dimension_semantics = [#tpu.dimension_semantics<parallel>, #tpu.dimension_semantics<arbitrary>], iteration_bounds = array<i64: 1, 1>, scalar_prefetch = 0 : i64, scratch_operands = 1 : i64, tpu.core_type = #tpu.core_type<tc>, window_params = [{transform_indices = @transform_0, window_bounds = array<i64: 16, 128>}, {transform_indices = @transform_1, window_bounds = array<i64: 16, 128>}, {transform_indices = @transform_2, window_bounds = array<i64: 1, 3, 8, 128>}]} {
    %c0_i32 = arith.constant 0 : i32
    %0 = arith.cmpi eq, %arg1, %c0_i32 : i32
    %1 = arith.extui %0 : i1 to i32
    %c0_i32_0 = arith.constant 0 : i32
    %2 = arith.cmpi ne, %1, %c0_i32_0 : i32
    scf.if %2 {
      %cst = arith.constant 0.000000e+00 : f32
      %16 = vector.broadcast %cst : f32 to vector<3x8x128xf32>
      %c0 = arith.constant 0 : index
      %c0_7 = arith.constant 0 : index
      %c0_8 = arith.constant 0 : index
      %17 = vector.load %arg5[%c0, %c0_7, %c0_8] : memref<3x8x128xf32, #tpu.memory_space<vmem>>, vector<3x8x128xf32>
      tpu.vector_store %arg5[%c0, %c0_7, %c0_8], %16 {strides = array<i32>} : memref<3x8x128xf32, #tpu.memory_space<vmem>>, vector<3x8x128xf32>,
    } else {
    }
    %c1_i32 = arith.constant 1 : i32
    %3 = arith.muli %arg0, %c1_i32 : i32
    %4 = arith.addi %3, %arg1 : i32
    %c2048_i32 = arith.constant 2048 : i32
    %5 = arith.muli %4, %c2048_i32 : i32
    %c2048_i32_1 = arith.constant 2048 : i32
    %6 = arith.addi %5, %c2048_i32_1 : i32
    %c2048_i32_2 = arith.constant 2048 : i32
    %7 = arith.cmpi sgt, %6, %c2048_i32_2 : i32
    %true = arith.constant true
    %8 = arith.xori %7, %true : i1
    %9 = arith.extui %8 : i1 to i32
    %c0_i32_3 = arith.constant 0 : i32
    %10 = arith.cmpi ne, %9, %c0_i32_3 : i32
    scf.if %10 {
      %c0_i32_7 = arith.constant 0 : i32
      %c16_i32 = arith.constant 16 : i32
      %16 = arith.muli %c0_i32_7, %c16_i32 : i32
      %17 = tpu.assume_multiple %16, 16 : i32
      %18 = arith.index_cast %17 : i32 to index
      %c0 = arith.constant 0 : index
      %19 = vector.load %arg2[%18, %c0] : memref<16x128xf32, #tpu.memory_space<vmem>>, vector<16x128xf32>
      %20 = arith.index_cast %17 : i32 to index
      %c0_8 = arith.constant 0 : index
      %21 = vector.load %arg3[%20, %c0_8] : memref<16x128xf32, #tpu.memory_space<vmem>>, vector<16x128xf32>
      %cst = arith.constant 0.000000e+00 : f32
      %22 = vector.broadcast %cst : f32 to vector<16x128xf32>
      %23 = arith.subf %22, %19 : vector<16x128xf32>
      %cst_9 = arith.constant 0.000000e+00 : f32
      %24 = vector.broadcast %cst_9 : f32 to vector<16x128xf32>
      %25 = arith.maximumf %23, %24 : vector<16x128xf32>
      %26 = math.absf %19 : vector<16x128xf32>
      %cst_10 = arith.constant 0.000000e+00 : f32
      %27 = vector.broadcast %cst_10 : f32 to vector<16x128xf32>
      %28 = arith.subf %27, %26 : vector<16x128xf32>
      %29 = math.exp %28 : vector<16x128xf32>
      %30 = math.log1p %29 : vector<16x128xf32>
      %31 = arith.addf %25, %30 : vector<16x128xf32>
      %cst_11 = arith.constant 0.000000e+00 : f32
      %32 = vector.broadcast %cst_11 : f32 to vector<16x128xf32>
      %33 = arith.subf %32, %31 : vector<16x128xf32>
      %34 = math.exp %33 : vector<16x128xf32>
      %cst_12 = arith.constant 1.000000e+02 : f32
      %35 = vector.broadcast %cst_12 : f32 to vector<16x128xf32>
      %36 = arith.minimumf %31, %35 : vector<16x128xf32>
      %37 = arith.addf %31, %19 : vector<16x128xf32>
      %cst_13 = arith.constant 1.000000e+02 : f32
      %38 = vector.broadcast %cst_13 : f32 to vector<16x128xf32>
      %39 = arith.minimumf %37, %38 : vector<16x128xf32>
      %40 = arith.subf %36, %39 : vector<16x128xf32>
      %41 = arith.mulf %21, %40 : vector<16x128xf32>
      %42 = arith.addf %39, %41 : vector<16x128xf32>
      %43 = arith.addf %34, %21 : vector<16x128xf32>
      %44 = arith.mulf %34, %21 : vector<16x128xf32>
      %c0_14 = arith.constant 0 : index
      %c0_15 = arith.constant 0 : index
      %c0_16 = arith.constant 0 : index
      %45 = vector.load %arg5[%c0_14, %c0_15, %c0_16] : memref<3x8x128xf32, #tpu.memory_space<vmem>>, vector<1x8x128xf32>
      %46 = vector.shape_cast %45 : vector<1x8x128xf32> to vector<8x128xf32>
      %47 = vector.shape_cast %43 : vector<16x128xf32> to vector<2x8x128xf32>
      %cst_17 = arith.constant dense<0.000000e+00> : vector<8x128xf32>
      %48 = vector.multi_reduction <add>, %47, %cst_17 [0] : vector<2x8x128xf32> to vector<8x128xf32>
      %49 = arith.addf %46, %48 : vector<8x128xf32>
      %c0_18 = arith.constant 0 : index
      %c0_19 = arith.constant 0 : index
      %c0_20 = arith.constant 0 : index
      %50 = vector.load %arg5[%c0_18, %c0_19, %c0_20] : memref<3x8x128xf32, #tpu.memory_space<vmem>>, vector<1x8x128xf32>
      %51 = vector.shape_cast %50 : vector<1x8x128xf32> to vector<8x128xf32>
      %52 = vector.shape_cast %49 : vector<8x128xf32> to vector<1x8x128xf32>
      tpu.vector_store %arg5[%c0_18, %c0_19, %c0_20], %52 {strides = array<i32>} : memref<3x8x128xf32, #tpu.memory_space<vmem>>, vector<1x8x128xf32>,
      %c1 = arith.constant 1 : index
      %c0_21 = arith.constant 0 : index
      %c0_22 = arith.constant 0 : index
      %53 = vector.load %arg5[%c1, %c0_21, %c0_22] : memref<3x8x128xf32, #tpu.memory_space<vmem>>, vector<1x8x128xf32>
      %54 = vector.shape_cast %53 : vector<1x8x128xf32> to vector<8x128xf32>
      %55 = vector.shape_cast %44 : vector<16x128xf32> to vector<2x8x128xf32>
      %cst_23 = arith.constant dense<0.000000e+00> : vector<8x128xf32>
      %56 = vector.multi_reduction <add>, %55, %cst_23 [0] : vector<2x8x128xf32> to vector<8x128xf32>
      %57 = arith.addf %54, %56 : vector<8x128xf32>
      %c1_24 = arith.constant 1 : index
      %c0_25 = arith.constant 0 : index
      %c0_26 = arith.constant 0 : index
      %58 = vector.load %arg5[%c1_24, %c0_25, %c0_26] : memref<3x8x128xf32, #tpu.memory_space<vmem>>, vector<1x8x128xf32>
      %59 = vector.shape_cast %58 : vector<1x8x128xf32> to vector<8x128xf32>
      %60 = vector.shape_cast %57 : vector<8x128xf32> to vector<1x8x128xf32>
      tpu.vector_store %arg5[%c1_24, %c0_25, %c0_26], %60 {strides = array<i32>} : memref<3x8x128xf32, #tpu.memory_space<vmem>>, vector<1x8x128xf32>,
      %c2 = arith.constant 2 : index
      %c0_27 = arith.constant 0 : index
      %c0_28 = arith.constant 0 : index
      %61 = vector.load %arg5[%c2, %c0_27, %c0_28] : memref<3x8x128xf32, #tpu.memory_space<vmem>>, vector<1x8x128xf32>
      %62 = vector.shape_cast %61 : vector<1x8x128xf32> to vector<8x128xf32>
      %63 = vector.shape_cast %42 : vector<16x128xf32> to vector<2x8x128xf32>
      %cst_29 = arith.constant dense<0.000000e+00> : vector<8x128xf32>
      %64 = vector.multi_reduction <add>, %63, %cst_29 [0] : vector<2x8x128xf32> to vector<8x128xf32>
      %65 = arith.addf %62, %64 : vector<8x128xf32>
      %c2_30 = arith.constant 2 : index
      %c0_31 = arith.constant 0 : index
      %c0_32 = arith.constant 0 : index
      %66 = vector.load %arg5[%c2_30, %c0_31, %c0_32] : memref<3x8x128xf32, #tpu.memory_space<vmem>>, vector<1x8x128xf32>
      %67 = vector.shape_cast %66 : vector<1x8x128xf32> to vector<8x128xf32>
      %68 = vector.shape_cast %65 : vector<8x128xf32> to vector<1x8x128xf32>
      tpu.vector_store %arg5[%c2_30, %c0_31, %c0_32], %68 {strides = array<i32>} : memref<3x8x128xf32, #tpu.memory_space<vmem>>, vector<1x8x128xf32>,
      %c1_i32_33 = arith.constant 1 : i32
    } else {
    }
    %11 = arith.extui %7 : i1 to i32
    %c0_i32_4 = arith.constant 0 : i32
    %12 = arith.cmpi ne, %11, %c0_i32_4 : i32
    scf.if %12 {
      %16 = tpu.iota {dimensions = array<i32: 0>} : vector<16x128xi32>
      %17 = tpu.iota {dimensions = array<i32: 1>} : vector<16x128xi32>
      %c0_i32_7 = arith.constant 0 : i32
      %c16_i32 = arith.constant 16 : i32
      %18 = arith.muli %c0_i32_7, %c16_i32 : i32
      %19 = tpu.assume_multiple %18, 16 : i32
      %20 = arith.index_cast %19 : i32 to index
      %c0 = arith.constant 0 : index
      %21 = vector.load %arg2[%20, %c0] : memref<16x128xf32, #tpu.memory_space<vmem>>, vector<16x128xf32>
      %22 = arith.index_cast %19 : i32 to index
      %c0_8 = arith.constant 0 : index
      %23 = vector.load %arg3[%22, %c0_8] : memref<16x128xf32, #tpu.memory_space<vmem>>, vector<16x128xf32>
      %24 = vector.broadcast %19 : i32 to vector<16x128xi32>
      %25 = arith.addi %24, %16 : vector<16x128xi32>
      %c128_i32 = arith.constant 128 : i32
      %26 = vector.broadcast %c128_i32 : i32 to vector<16x128xi32>
      %27 = arith.muli %25, %26 : vector<16x128xi32>
      %28 = vector.broadcast %5 : i32 to vector<16x128xi32>
      %29 = arith.addi %28, %27 : vector<16x128xi32>
      %30 = arith.addi %29, %17 : vector<16x128xi32>
      %c2048_i32_9 = arith.constant 2048 : i32
      %31 = vector.broadcast %c2048_i32_9 : i32 to vector<16x128xi32>
      %32 = arith.cmpi slt, %30, %31 : vector<16x128xi32>
      %cst = arith.constant 0.000000e+00 : f32
      %33 = vector.broadcast %cst : f32 to vector<16x128xf32>
      %34 = arith.subf %33, %21 : vector<16x128xf32>
      %cst_10 = arith.constant 0.000000e+00 : f32
      %35 = vector.broadcast %cst_10 : f32 to vector<16x128xf32>
      %36 = arith.maximumf %34, %35 : vector<16x128xf32>
      %37 = math.absf %21 : vector<16x128xf32>
      %cst_11 = arith.constant 0.000000e+00 : f32
      %38 = vector.broadcast %cst_11 : f32 to vector<16x128xf32>
      %39 = arith.subf %38, %37 : vector<16x128xf32>
      %40 = math.exp %39 : vector<16x128xf32>
      %41 = math.log1p %40 : vector<16x128xf32>
      %42 = arith.addf %36, %41 : vector<16x128xf32>
      %cst_12 = arith.constant 0.000000e+00 : f32
      %43 = vector.broadcast %cst_12 : f32 to vector<16x128xf32>
      %44 = arith.subf %43, %42 : vector<16x128xf32>
      %45 = math.exp %44 : vector<16x128xf32>
      %cst_13 = arith.constant 1.000000e+02 : f32
      %46 = vector.broadcast %cst_13 : f32 to vector<16x128xf32>
      %47 = arith.minimumf %42, %46 : vector<16x128xf32>
      %48 = arith.addf %42, %21 : vector<16x128xf32>
      %cst_14 = arith.constant 1.000000e+02 : f32
      %49 = vector.broadcast %cst_14 : f32 to vector<16x128xf32>
      %50 = arith.minimumf %48, %49 : vector<16x128xf32>
      %51 = arith.subf %47, %50 : vector<16x128xf32>
      %52 = arith.mulf %23, %51 : vector<16x128xf32>
      %53 = arith.addf %50, %52 : vector<16x128xf32>
      %54 = arith.addf %45, %23 : vector<16x128xf32>
      %55 = arith.mulf %45, %23 : vector<16x128xf32>
      %cst_15 = arith.constant 0.000000e+00 : f32
      %56 = vector.broadcast %cst_15 : f32 to vector<16x128xf32>
      %57 = arith.select %32, %54, %56 : vector<16x128xi1>, vector<16x128xf32>
      %cst_16 = arith.constant 0.000000e+00 : f32
      %58 = vector.broadcast %cst_16 : f32 to vector<16x128xf32>
      %59 = arith.select %32, %55, %58 : vector<16x128xi1>, vector<16x128xf32>
      %cst_17 = arith.constant 0.000000e+00 : f32
      %60 = vector.broadcast %cst_17 : f32 to vector<16x128xf32>
      %61 = arith.select %32, %53, %60 : vector<16x128xi1>, vector<16x128xf32>
      %c0_18 = arith.constant 0 : index
      %c0_19 = arith.constant 0 : index
      %c0_20 = arith.constant 0 : index
      %62 = vector.load %arg5[%c0_18, %c0_19, %c0_20] : memref<3x8x128xf32, #tpu.memory_space<vmem>>, vector<1x8x128xf32>
      %63 = vector.shape_cast %62 : vector<1x8x128xf32> to vector<8x128xf32>
      %64 = vector.shape_cast %57 : vector<16x128xf32> to vector<2x8x128xf32>
      %cst_21 = arith.constant dense<0.000000e+00> : vector<8x128xf32>
      %65 = vector.multi_reduction <add>, %64, %cst_21 [0] : vector<2x8x128xf32> to vector<8x128xf32>
      %66 = arith.addf %63, %65 : vector<8x128xf32>
      %c0_22 = arith.constant 0 : index
      %c0_23 = arith.constant 0 : index
      %c0_24 = arith.constant 0 : index
      %67 = vector.load %arg5[%c0_22, %c0_23, %c0_24] : memref<3x8x128xf32, #tpu.memory_space<vmem>>, vector<1x8x128xf32>
      %68 = vector.shape_cast %67 : vector<1x8x128xf32> to vector<8x128xf32>
      %69 = vector.shape_cast %66 : vector<8x128xf32> to vector<1x8x128xf32>
      tpu.vector_store %arg5[%c0_22, %c0_23, %c0_24], %69 {strides = array<i32>} : memref<3x8x128xf32, #tpu.memory_space<vmem>>, vector<1x8x128xf32>,
      %c1 = arith.constant 1 : index
      %c0_25 = arith.constant 0 : index
      %c0_26 = arith.constant 0 : index
      %70 = vector.load %arg5[%c1, %c0_25, %c0_26] : memref<3x8x128xf32, #tpu.memory_space<vmem>>, vector<1x8x128xf32>
      %71 = vector.shape_cast %70 : vector<1x8x128xf32> to vector<8x128xf32>
      %72 = vector.shape_cast %59 : vector<16x128xf32> to vector<2x8x128xf32>
      %cst_27 = arith.constant dense<0.000000e+00> : vector<8x128xf32>
      %73 = vector.multi_reduction <add>, %72, %cst_27 [0] : vector<2x8x128xf32> to vector<8x128xf32>
      %74 = arith.addf %71, %73 : vector<8x128xf32>
      %c1_28 = arith.constant 1 : index
      %c0_29 = arith.constant 0 : index
      %c0_30 = arith.constant 0 : index
      %75 = vector.load %arg5[%c1_28, %c0_29, %c0_30] : memref<3x8x128xf32, #tpu.memory_space<vmem>>, vector<1x8x128xf32>
      %76 = vector.shape_cast %75 : vector<1x8x128xf32> to vector<8x128xf32>
      %77 = vector.shape_cast %74 : vector<8x128xf32> to vector<1x8x128xf32>
      tpu.vector_store %arg5[%c1_28, %c0_29, %c0_30], %77 {strides = array<i32>} : memref<3x8x128xf32, #tpu.memory_space<vmem>>, vector<1x8x128xf32>,
      %c2 = arith.constant 2 : index
      %c0_31 = arith.constant 0 : index
      %c0_32 = arith.constant 0 : index
      %78 = vector.load %arg5[%c2, %c0_31, %c0_32] : memref<3x8x128xf32, #tpu.memory_space<vmem>>, vector<1x8x128xf32>
      %79 = vector.shape_cast %78 : vector<1x8x128xf32> to vector<8x128xf32>
      %80 = vector.shape_cast %61 : vector<16x128xf32> to vector<2x8x128xf32>
      %cst_33 = arith.constant dense<0.000000e+00> : vector<8x128xf32>
      %81 = vector.multi_reduction <add>, %80, %cst_33 [0] : vector<2x8x128xf32> to vector<8x128xf32>
      %82 = arith.addf %79, %81 : vector<8x128xf32>
      %c2_34 = arith.constant 2 : index
      %c0_35 = arith.constant 0 : index
      %c0_36 = arith.constant 0 : index
      %83 = vector.load %arg5[%c2_34, %c0_35, %c0_36] : memref<3x8x128xf32, #tpu.memory_space<vmem>>, vector<1x8x128xf32>
      %84 = vector.shape_cast %83 : vector<1x8x128xf32> to vector<8x128xf32>
      %85 = vector.shape_cast %82 : vector<8x128xf32> to vector<1x8x128xf32>
      tpu.vector_store %arg5[%c2_34, %c0_35, %c0_36], %85 {strides = array<i32>} : memref<3x8x128xf32, #tpu.memory_space<vmem>>, vector<1x8x128xf32>,
      %c1_i32_37 = arith.constant 1 : i32
    } else {
    }
    %c0_i32_5 = arith.constant 0 : i32
    %13 = arith.cmpi eq, %arg1, %c0_i32_5 : i32
    %14 = arith.extui %13 : i1 to i32
    %c0_i32_6 = arith.constant 0 : i32
    %15 = arith.cmpi ne, %14, %c0_i32_6 : i32
    scf.if %15 {
      %c0 = arith.constant 0 : index
      %c0_7 = arith.constant 0 : index
      %c0_8 = arith.constant 0 : index
      %16 = vector.load %arg5[%c0, %c0_7, %c0_8] : memref<3x8x128xf32, #tpu.memory_space<vmem>>, vector<3x8x128xf32>
      %c0_9 = arith.constant 0 : index
      %c0_10 = arith.constant 0 : index
      %c0_11 = arith.constant 0 : index
      %c0_12 = arith.constant 0 : index
      %17 = vector.load %arg4[%c0_9, %c0_10, %c0_11, %c0_12] : memref<1x3x8x128xf32, #tpu.memory_space<vmem>>, vector<1x3x8x128xf32>
      %18 = vector.shape_cast %17 : vector<1x3x8x128xf32> to vector<3x8x128xf32>
      %19 = vector.shape_cast %16 : vector<3x8x128xf32> to vector<1x3x8x128xf32>
      tpu.vector_store %arg4[%c0_9, %c0_10, %c0_11, %c0_12], %19 {strides = array<i32>} : memref<1x3x8x128xf32, #tpu.memory_space<vmem>>, vector<1x3x8x128xf32>,
    } else {
    }
    return
  }
  func.func @transform_0(%arg0: i32, %arg1: i32) -> (i32, i32) {
    %c1_i32 = arith.constant 1 : i32
    %0 = arith.muli %arg0, %c1_i32 : i32
    %1 = arith.addi %0, %arg1 : i32
    %c0_i32 = arith.constant 0 : i32
    %2 = arith.minsi %1, %c0_i32 : i32
    %c0_i32_0 = arith.constant 0 : i32
    %c0_i32_1 = arith.constant 0 : i32
    return %2, %c0_i32_0 : i32, i32
  }
  func.func @transform_1(%arg0: i32, %arg1: i32) -> (i32, i32) {
    %c1_i32 = arith.constant 1 : i32
    %0 = arith.muli %arg0, %c1_i32 : i32
    %1 = arith.addi %0, %arg1 : i32
    %c0_i32 = arith.constant 0 : i32
    %2 = arith.minsi %1, %c0_i32 : i32
    %c0_i32_0 = arith.constant 0 : i32
    %c0_i32_1 = arith.constant 0 : i32
    return %2, %c0_i32_0 : i32, i32
  }
  func.func @transform_2(%arg0: i32, %arg1: i32) -> (i32, i32, i32, i32) {
    %c0_i32 = arith.constant 0 : i32
    %c0_i32_0 = arith.constant 0 : i32
    %c0_i32_1 = arith.constant 0 : i32
    %c0_i32_2 = arith.constant 0 : i32
    return %arg0, %c0_i32, %c0_i32_0, %c0_i32_1 : i32, i32, i32, i32
  }
}

</mosaic_0001>

<llo_original>
// kernel: tpu_custom_call.1
$region0: #{tpu_custom_call.1}
  #allocation0 [shape = 'u32[]', space=smem, size = 0x4, offset = 0x4, fixed_abs, tag = 'smem constant byte address 0x4 - core index']
  #allocation1 [shape = 'u32[144,128]{1,0:T(1,128)}', space=vmem, size = 0x12000, scoped, tag = 'internal scratch']
  #allocation2 [shape = 'f32[3,8,128]{2,1,0:T(8,128)}', space=vmem, size = 0x3000, scoped, tag = 'scratch operand']
  %s0 = inlined_call_operand.hbm [shape: f32[16,128], index: 0, kind: input, shape index: {}]
  %s1 = inlined_call_operand.hbm [shape: f32[16,128], index: 1, kind: input, shape index: {}]
  %s2 = inlined_call_operand.hbm [shape: f32[1,3,8,128], index: 2, kind: output, shape index: {}]
  %s3 = sld [smem:[#allocation0]]
  $region42: #{tpu_custom_call.1} parent=0
    _
  %s5 = ssub.s32 1, %s3
  %s6 = scalar_select 0, %s5, %s3
  $region1: #{tpu_custom_call.1} parent=0
    #allocation3 [shape = 'u8[8192]{0}', space=vmem, size = 0x2000, scoped, tag = 'input window, operand 0, single buffered']
    #allocation4 [shape = 's32[1]{0}', space=sflag, size = 0x4, scoped, tag = 'scoped memory for tpu_custom_call.1']
    #allocation5 [shape = 's32[1]{0}', space=sflag, size = 0x4, scoped, tag = 'scoped memory for tpu_custom_call.1']
    #allocation6 [shape = 'u8[8192]{0}', space=vmem, size = 0x2000, scoped, tag = 'input window, operand 1, single buffered']
    #allocation7 [shape = 's32[1]{0}', space=sflag, size = 0x4, scoped, tag = 'scoped memory for tpu_custom_call.1']
    #allocation8 [shape = 'u8[12288]{0}', space=vmem, size = 0x3000, scoped, tag = 'output window, operand 0, single buffered']
    %7 = vsyncpa [#allocation4], 0
    %8 = vsyncpa [#allocation7], 0
    %9 = vsyncpa [#allocation5], 0
    // Predicated region
    $region2: #{tpu_custom_call.1} parent=1 // pred_check
      _
    $region3: #{tpu_custom_call.1} parent=1 // pred_check_branch
      %11 = sbr.rel (0) target = $region5
    $region4: #{tpu_custom_call.1} parent=1 // pred_region
      %s12 = sadd.s32 0, 0
      %p13 = scmp.lt.s32.totalorder %s12, 0
      %s14 = scalar_select %p13, %s12, 0
      %s15 = smul.u32 2, %s14
      %s17 = ssub.s32 256, 256
      %18 = vsyncadd [#allocation4], %s17
      %s19 = smul.addr %s15, 128
      %s20 = scalar_lea.hbm %s0, %s19
      %s21 = sshll.u32 [#allocation3], 4
      %s22 = int_to_ptr.vmem [resolvable:$true] %s21
      %27 = dma.hbm_to_vmem [thread:$0]  %s20, 256, %s22, [#allocation4], 128, 128, 8
    $region5: #{tpu_custom_call.1} parent=1 // pred_fallthru
      _
    // Predicated region
    $region6: #{tpu_custom_call.1} parent=1 // pred_check
      _
    $region7: #{tpu_custom_call.1} parent=1 // pred_check_branch
      %29 = sbr.rel (0) target = $region9
    $region8: #{tpu_custom_call.1} parent=1 // pred_region
      %s30 = sadd.s32 0, 0
      %p31 = scmp.lt.s32.totalorder %s30, 0
      %s32 = scalar_select %p31, %s30, 0
      %s33 = smul.u32 2, %s32
      %s35 = ssub.s32 256, 256
      %36 = vsyncadd [#allocation7], %s35
      %s37 = smul.addr %s33, 128
      %s38 = scalar_lea.hbm %s1, %s37
      %s39 = sshll.u32 [#allocation6], 4
      %s40 = int_to_ptr.vmem [resolvable:$true] %s39
      %45 = dma.hbm_to_vmem [thread:$0]  %s38, 256, %s40, [#allocation7], 128, 128, 8
    $region9: #{tpu_custom_call.1} parent=1 // pred_fallthru
      _
    // Predicated region
    $region10: #{tpu_custom_call.1} parent=1 // pred_check
      _
    $region11: #{tpu_custom_call.1} parent=1 // pred_check_branch
      %47 = sbr.rel (0) target = $region13
    $region12: #{tpu_custom_call.1} parent=1 // pred_region
      %48 = dma.done [#allocation4], 256
    $region13: #{tpu_custom_call.1} parent=1 // pred_fallthru
      _
    // Predicated region
    $region14: #{tpu_custom_call.1} parent=1 // pred_check
      _
    $region15: #{tpu_custom_call.1} parent=1 // pred_check_branch
      %50 = sbr.rel (0) target = $region17
    $region16: #{tpu_custom_call.1} parent=1 // pred_region
      %51 = dma.done [#allocation7], 256
    $region17: #{tpu_custom_call.1} parent=1 // pred_fallthru
      _
    %s52 = sadd.s32 0, 0
    %p53 = scmp.lt.s32.totalorder %s52, 0
    %s54 = scalar_select %p53, %s52, 0
    %s55 = smul.u32 2, %s54
    %s56 = sadd.s32 0, 0
    %p57 = scmp.lt.s32.totalorder %s56, 0
    %s58 = scalar_select %p57, %s56, 0
    %s59 = smul.u32 2, %s58
    %p60 = scmp.eq.s32.totalorder 0, 0
    // Predicated region
    $region18: #{tpu_custom_call.1} parent=1 // pred_check
      %p61 = pneg %p60
    $region19: #{tpu_custom_call.1} parent=1 // pred_check_branch
      %63 = sbr.rel (%p61) target = $region21
    $region20: #{tpu_custom_call.1} parent=1 // pred_region
      %64 = vst [vmem:[#allocation2] sm:$0xff] 0.0
      %65 = vst [vmem:[#allocation2 + $0x8] sm:$0xff] 0.0
      %66 = vst [vmem:[#allocation2 + $0x10] sm:$0xff] 0.0
    $region21: #{tpu_custom_call.1} parent=1 // pred_fallthru
      _
    %s67 = sadd.s32 0, 0
    %s68 = smul.u32 %s67, 2048
    %s69 = sadd.s32 %s68, 2048
    %p70 = scmp.gt.s32.totalorder %s69, 2048
    %p71 = scmp.le.s32.totalorder %s69, 2048
    // Predicated region
    $region22: #{tpu_custom_call.1} parent=1 // pred_check
      %p72 = pneg %p71
    $region23: #{tpu_custom_call.1} parent=1 // pred_check_branch
      %74 = sbr.rel (%p72) target = $region25
    $region24: #{tpu_custom_call.1} parent=1 // pred_region
      %v75 = vld [vmem:[#allocation3] sm:$0xff]
      %v76 = vld [vmem:[#allocation3 + $0x8] sm:$0xff]
      %v77 = vld [vmem:[#allocation6] sm:$0xff]
      %v78 = vld [vmem:[#allocation6 + $0x8] sm:$0xff]
      %v79 = vsub.f32 0.0, %v75
      %v80 = vsub.f32 0.0, %v76
      %v81 = vmax.f32 %v79, 0.0
      %v82 = vmax.f32 %v80, 0.0
      %v83 = vand.u32 2147483647, %v75
      %v84 = vand.u32 2147483647, %v76
      %v85 = vsub.f32 0.0, %v83
      %v86 = vsub.f32 0.0, %v84
      %v87 = vmul.f32 %v85, 1.442695
      %v88 = vpow.pop %v87
      %v89 = vmul.f32 %v86, 1.442695
      %v90 = vpow.pop %v89
      %v91 = vadd.f32 %v88, 1.0
      %v92 = vlog2.pop %v91
      %v93 = vmul.f32 %v92, 0.6931472
      %v94 = vmul.f32 -0.5, %v88
      %v95 = vadd.f32 %v94, 1.0
      %v96 = vmul.f32 %v95, %v88
      %v97 = vand.u32 2147483647, %v88
      %vm98 = vcmp.lt.f32.partialorder %v97, 0.0004427343
      %v99 = vsel %vm98, %v96, %v93
      %v100 = vadd.f32 %v90, 1.0
      %v101 = vlog2.pop %v100
      %v102 = vmul.f32 %v101, 0.6931472
      %v103 = vmul.f32 -0.5, %v90
      %v104 = vadd.f32 %v103, 1.0
      %v105 = vmul.f32 %v104, %v90
      %v106 = vand.u32 2147483647, %v90
      %vm107 = vcmp.lt.f32.partialorder %v106, 0.0004427343
      %v108 = vsel %vm107, %v105, %v102
      %v109 = vadd.f32 %v81, %v99
      %v110 = vadd.f32 %v82, %v108
      %v111 = vsub.f32 0.0, %v109
      %v112 = vsub.f32 0.0, %v110
      %v113 = vmul.f32 %v111, 1.442695
      %v114 = vpow.pop %v113
      %v115 = vmul.f32 %v112, 1.442695
      %v116 = vpow.pop %v115
      %v117 = vmin.f32 %v109, 100.0
      %v118 = vmin.f32 %v110, 100.0
      %v119 = vadd.f32 %v109, %v75
      %v120 = vadd.f32 %v110, %v76
      %v121 = vmin.f32 %v119, 100.0
      %v122 = vmin.f32 %v120, 100.0
      %v123 = vsub.f32 %v117, %v121
      %v124 = vsub.f32 %v118, %v122
      %v125 = vmul.f32 %v77, %v123
      %v126 = vmul.f32 %v78, %v124
      %v127 = vadd.f32 %v121, %v125
      %v128 = vadd.f32 %v122, %v126
      %v129 = vadd.f32 %v114, %v77
      %v130 = vadd.f32 %v116, %v78
      %v131 = vmul.f32 %v114, %v77
      %v132 = vmul.f32 %v116, %v78
      %v133 = vld [vmem:[#allocation2] sm:$0xff]
      %v134 = vadd.f32 %v129, %v130
      %v135 = vadd.f32 %v133, %v134
      %136 = vst [vmem:[#allocation2] sm:$0xff] %v135
      %s137 = scalar_lea.vmem [#allocation2], 8
      %v138 = vld [vmem:[%s137] sm:$0xff]
      %v139 = vadd.f32 %v131, %v132
      %v140 = vadd.f32 %v138, %v139
      %141 = vst [vmem:[%s137] sm:$0xff] %v140
      %s142 = scalar_lea.vmem [#allocation2], 16
      %v143 = vld [vmem:[%s142] sm:$0xff]
      %v144 = vadd.f32 %v127, %v128
      %v145 = vadd.f32 %v143, %v144
      %146 = vst [vmem:[%s142] sm:$0xff] %v145
    $region25: #{tpu_custom_call.1} parent=1 // pred_fallthru
      _
    // Predicated region
    $region26: #{tpu_custom_call.1} parent=1 // pred_check
      %p147 = pneg %p70
    $region27: #{tpu_custom_call.1} parent=1 // pred_check_branch
      %149 = sbr.rel (%p147) target = $region29
    $region28: #{tpu_custom_call.1} parent=1 // pred_region
      %v150 = vlaneseq
      %v151 = vshrl.u32 %v150, 7
      %v152 = vadd.s32 %v151, 8
      %v153 = vlaneseq
      %v154 = vand.u32 %v153, 127
      %v155 = vld [vmem:[#allocation3] sm:$0xff]
      %v156 = vld [vmem:[#allocation3 + $0x8] sm:$0xff]
      %v157 = vld [vmem:[#allocation6] sm:$0xff]
      %v158 = vld [vmem:[#allocation6 + $0x8] sm:$0xff]
      %v159 = vstv 0
      %v160 = vadd.s32 %v159, %v151
      %v161 = vadd.s32 %v159, %v152
      %v162 = vmul.u32 %v160, 128
      %v163 = vmul.u32 %v161, 128
      %v164 = vstv %s68
      %v165 = vadd.s32 %v164, %v162
      %v166 = vadd.s32 %v164, %v163
      %v167 = vadd.s32 %v165, %v154
      %v168 = vadd.s32 %v166, %v154
      %vm169 = vcmp.lt.s32.totalorder %v167, 2048
      %vm170 = vcmp.lt.s32.totalorder %v168, 2048
      %v171 = vsub.f32 0.0, %v155
      %v172 = vsub.f32 0.0, %v156
      %v173 = vmax.f32 %v171, 0.0
      %v174 = vmax.f32 %v172, 0.0
      %v175 = vand.u32 2147483647, %v155
      %v176 = vand.u32 2147483647, %v156
      %v177 = vsub.f32 0.0, %v175
      %v178 = vsub.f32 0.0, %v176
      %v179 = vmul.f32 %v177, 1.442695
      %v180 = vpow.pop %v179
      %v181 = vmul.f32 %v178, 1.442695
      %v182 = vpow.pop %v181
      %v183 = vadd.f32 %v180, 1.0
      %v184 = vlog2.pop %v183
      %v185 = vmul.f32 %v184, 0.6931472
      %v186 = vmul.f32 -0.5, %v180
      %v187 = vadd.f32 %v186, 1.0
      %v188 = vmul.f32 %v187, %v180
      %v189 = vand.u32 2147483647, %v180
      %vm190 = vcmp.lt.f32.partialorder %v189, 0.0004427343
      %v191 = vsel %vm190, %v188, %v185
      %v192 = vadd.f32 %v182, 1.0
      %v193 = vlog2.pop %v192
      %v194 = vmul.f32 %v193, 0.6931472
      %v195 = vmul.f32 -0.5, %v182
      %v196 = vadd.f32 %v195, 1.0
      %v197 = vmul.f32 %v196, %v182
      %v198 = vand.u32 2147483647, %v182
      %vm199 = vcmp.lt.f32.partialorder %v198, 0.0004427343
      %v200 = vsel %vm199, %v197, %v194
      %v201 = vadd.f32 %v173, %v191
      %v202 = vadd.f32 %v174, %v200
      %v203 = vsub.f32 0.0, %v201
      %v204 = vsub.f32 0.0, %v202
      %v205 = vmul.f32 %v203, 1.442695
      %v206 = vpow.pop %v205
      %v207 = vmul.f32 %v204, 1.442695
      %v208 = vpow.pop %v207
      %v209 = vmin.f32 %v201, 100.0
      %v210 = vmin.f32 %v202, 100.0
      %v211 = vadd.f32 %v201, %v155
      %v212 = vadd.f32 %v202, %v156
      %v213 = vmin.f32 %v211, 100.0
      %v214 = vmin.f32 %v212, 100.0
      %v215 = vsub.f32 %v209, %v213
      %v216 = vsub.f32 %v210, %v214
      %v217 = vmul.f32 %v157, %v215
      %v218 = vmul.f32 %v158, %v216
      %v219 = vadd.f32 %v213, %v217
      %v220 = vadd.f32 %v214, %v218
      %v221 = vadd.f32 %v206, %v157
      %v222 = vadd.f32 %v208, %v158
      %v223 = vmul.f32 %v206, %v157
      %v224 = vmul.f32 %v208, %v158
      %v225 = vsel %vm169, %v221, 0.0
      %v226 = vsel %vm170, %v222, 0.0
      %v227 = vsel %vm169, %v223, 0.0
      %v228 = vsel %vm170, %v224, 0.0
      %v229 = vsel %vm169, %v219, 0.0
      %v230 = vsel %vm170, %v220, 0.0
      %v231 = vld [vmem:[#allocation2] sm:$0xff]
      %v232 = vadd.f32 %v225, %v226
      %v233 = vadd.f32 %v231, %v232
      %234 = vst [vmem:[#allocation2] sm:$0xff] %v233
      %s235 = scalar_lea.vmem [#allocation2], 8
      %v236 = vld [vmem:[%s235] sm:$0xff]
      %v237 = vadd.f32 %v227, %v228
      %v238 = vadd.f32 %v236, %v237
      %239 = vst [vmem:[%s235] sm:$0xff] %v238
      %s240 = scalar_lea.vmem [#allocation2], 16
      %v241 = vld [vmem:[%s240] sm:$0xff]
      %v242 = vadd.f32 %v229, %v230
      %v243 = vadd.f32 %v241, %v242
      %244 = vst [vmem:[%s240] sm:$0xff] %v243
    $region29: #{tpu_custom_call.1} parent=1 // pred_fallthru
      _
    // Predicated region
    $region30: #{tpu_custom_call.1} parent=1 // pred_check
      %p245 = pneg %p60
    $region31: #{tpu_custom_call.1} parent=1 // pred_check_branch
      %247 = sbr.rel (%p245) target = $region33
    $region32: #{tpu_custom_call.1} parent=1 // pred_region
      %v248 = vld [vmem:[#allocation2] sm:$0xff]
      %v249 = vld [vmem:[#allocation2 + $0x8] sm:$0xff]
      %v250 = vld [vmem:[#allocation2 + $0x10] sm:$0xff]
      %251 = vst [vmem:[#allocation8] sm:$0xff] %v248
      %252 = vst [vmem:[#allocation8 + $0x8] sm:$0xff] %v249
      %253 = vst [vmem:[#allocation8 + $0x10] sm:$0xff] %v250
    $region33: #{tpu_custom_call.1} parent=1 // pred_fallthru
      _
    // Predicated region
    $region34: #{tpu_custom_call.1} parent=1 // pred_check
      _
    $region35: #{tpu_custom_call.1} parent=1 // pred_check_branch
      %255 = sbr.rel (0) target = $region37
    $region36: #{tpu_custom_call.1} parent=1 // pred_region
      %s257 = ssub.s32 384, 384
      %258 = vsyncadd [#allocation5], %s257
      %s259 = sshll.u32 [#allocation8], 4
      %s260 = int_to_ptr.vmem [resolvable:$true] %s259
      %265 = dma.vmem_to_hbm [thread:$0]  %s260, 384, %s2, [#allocation5], 128, 128, 8
    $region37: #{tpu_custom_call.1} parent=1 // pred_fallthru
      _
    // Predicated region
    $region38: #{tpu_custom_call.1} parent=1 // pred_check
      _
    $region39: #{tpu_custom_call.1} parent=1 // pred_check_branch
      %267 = sbr.rel (0) target = $region41
    $region40: #{tpu_custom_call.1} parent=1 // pred_region
      %268 = dma.done [#allocation5], 384
    $region41: #{tpu_custom_call.1} parent=1 // pred_fallthru
      _
    %269 = vsyncpa [#allocation4], 1
    %270 = vsyncpa [#allocation7], 1
    %271 = vsyncpa [#allocation5], 1

</llo_original>
